<compile_context>
chip_gen: v7x
topology: tpu7x:2x2x1
jax: 0.10.0
libtpu: 0.0.40
codegen_flags: <defaults>
</compile_context>

<pallas_src>
import jax
import jax.numpy as jnp
from jax.experimental import pallas as pl
from jax.experimental.pallas import tpu as pltpu


def _conv1x1_bn_relu6_kernel(x_ref, w_ref, shift_ref, o_ref):
    # x_ref:     (Nb, C_in, ts)   spatial tile(s), channels on sublanes, native dtype
    # w_ref:     (C_out, C_in)    BN-scale-folded weight (resident), native dtype
    # shift_ref: (C_out, 1)       folded BN shift = beta - mean * scale (f32)
    # o_ref:     (Nb, C_out, ts)  output tile, written directly in NCHW layout
    nb, c_in, ts = x_ref.shape
    c_out = w_ref.shape[0]

    w = w_ref[...]                                   # (C_out, C_in)
    shift = shift_ref[...].astype(jnp.float32)       # (C_out, 1)

    # MXU once channel counts make a padded matmul cheaper than 2*C_in VALU
    # passes over the (C_out, ts) tile.
    use_mxu = (c_in >= 16) and (c_out >= 8)

    for n in range(nb):                              # static unroll, Nb is small
        x = x_ref[n]                                 # (C_in, ts), native dtype
        if use_mxu:
            acc = jnp.dot(w, x, preferred_element_type=jnp.float32)
        else:
            # Tiny channel counts: broadcasted VPU FMAs over the lane-dense
            # (C_out, ts) tile; accumulator initialized with the k=0 product.
            acc = (w[:, 0:1] * x[0:1, :]).astype(jnp.float32)
            for k in range(1, c_in):                 # static, unrolled
                acc = acc + w[:, k:k + 1] * x[k:k + 1, :]

        y = acc + shift                              # (C_out, ts) + (C_out, 1)
        o_ref[n] = jnp.clip(y, 0.0, 6.0).astype(o_ref.dtype)


def conv1_1_block(x_nchw, weight, gamma, beta, running_mean, running_var,
                  eps=1e-5):
    """Fused 1x1 conv + BatchNorm2d (inference) + ReLU6.  NCHW in, NCHW out.

    x_nchw: (N, C_in, H, W).  weight: (C_out, C_in) or (C_out, C_in, 1, 1).
    """
    N, C_in, H, W = x_nchw.shape
    weight = jnp.asarray(weight).reshape(weight.shape[0], -1)   # squeeze 1x1 taps
    C_out = weight.shape[0]
    HW = H * W
    dtype = x_nchw.dtype
    itemsize = jnp.dtype(dtype).itemsize

    # Fold BatchNorm (inference) into the weight + a per-channel shift.
    scale = (gamma.astype(jnp.float32)
             / jnp.sqrt(running_var.astype(jnp.float32) + eps))          # (C_out,)
    shift = (beta.astype(jnp.float32)
             - running_mean.astype(jnp.float32) * scale).reshape(C_out, 1)
    w_scaled = (weight.astype(jnp.float32) * scale[:, None]).astype(dtype)

    # Generation-aware VMEM capacity (v5e/v6e: 128 MiB, v7x: 64 MiB).
    try:
        vmem_cap = int(getattr(pltpu.get_tpu_info(), "vmem_capacity_bytes",
                               64 * 1024 * 1024))
    except Exception:
        vmem_cap = 64 * 1024 * 1024

    # Spatial tile: as big as fits a ~1/8-of-VMEM double-buffered x+out budget.
    tile_budget = max(2 * 1024 * 1024, vmem_cap // 8)
    per_lane_bytes = 2 * (C_in + C_out) * itemsize        # double-buffered x + out
    ts_max = max(128, (tile_budget // per_lane_bytes) // 128 * 128)
    ts_max = min(ts_max, 65536)
    if HW <= ts_max:
        ts = HW                    # block == full array dim (no (8,128) issue)
    else:
        ts = ts_max                # multiple of 128; Pallas masks boundary block
    spatial_steps = pl.cdiv(HW, ts)

    # Batch images per grid step when one image's spatial fits a single tile,
    # but keep >= 2 grid steps when N allows (v7x megacore occupancy).
    nb = 1
    if spatial_steps == 1 and N > 1:
        per_image_bytes = 2 * (C_in + C_out) * HW * itemsize
        nb_budget = max(1, int(tile_budget // max(per_image_bytes, 1)))
        nb_target = max(1, min(nb_budget, N // 2))
        for d in range(min(nb_target, N), 0, -1):         # largest divisor of N
            if N % d == 0:
                nb = d
                break
    grid = (N // nb, spatial_steps)

    # VMEM request: double-buffered x/out tiles + resident weight/shift + headroom.
    vmem_needed = (2 * nb * (C_in + C_out) * ts * itemsize
                   + C_out * C_in * itemsize + C_out * 4)
    vmem_limit = int(min(max(4 * vmem_needed, 8 * 1024 * 1024), vmem_cap // 2))

    out_flat = pl.pallas_call(
        _conv1x1_bn_relu6_kernel,
        out_shape=jax.ShapeDtypeStruct((N, C_out, HW), dtype),
        grid_spec=pltpu.PrefetchScalarGridSpec(
            num_scalar_prefetch=0,
            grid=grid,
            in_specs=[
                pl.BlockSpec((nb, C_in, ts), lambda n, s: (n, 0, s)),
                pl.BlockSpec((C_out, C_in), lambda n, s: (0, 0)),
                pl.BlockSpec((C_out, 1), lambda n, s: (0, 0)),
            ],
            out_specs=pl.BlockSpec((nb, C_out, ts), lambda n, s: (n, 0, s)),
        ),
        compiler_params=pltpu.CompilerParams(
            dimension_semantics=("parallel", "parallel"),
            vmem_limit_bytes=vmem_limit,
        ),
    )(x_nchw.reshape(N, C_in, HW), w_scaled, shift)

    # Free reshape back to (N, C_out, H, W): no pad to strip, no transpose.
    return out_flat.reshape(N, C_out, H, W)


def _reference(x, weight, gamma, beta, running_mean, running_var, eps=1e-5):
    weight = jnp.asarray(weight).reshape(weight.shape[0], -1)
    scale = gamma / jnp.sqrt(running_var + eps)
    shift = beta - running_mean * scale
    ref = jnp.einsum('nchw,oc->nohw', x, weight)
    ref = ref * scale[None, :, None, None] + shift[None, :, None, None]
    return jnp.clip(ref, 0.0, 6.0)


if __name__ == "__main__":
    key = jax.random.PRNGKey(0)

    # Case 1: shapes matching the module's common use (in_ch=4 -> block_ch=8),
    # exercises the small-channel VPU branch.
    N, in_ch, H, W = 2, 4, 16, 16
    block_ch = 8
    k_x, k_w, k_g, k_b, k_m, k_v, key = jax.random.split(key, 7)
    x = jax.random.normal(k_x, (N, in_ch, H, W), dtype=jnp.float32)
    weight = jax.random.normal(k_w, (block_ch, in_ch), dtype=jnp.float32) * 0.1
    gamma = 1.0 + 0.05 * jax.random.normal(k_g, (block_ch,), dtype=jnp.float32)
    beta = 0.05 * jax.random.normal(k_b, (block_ch,), dtype=jnp.float32)
    running_mean = 0.1 * jax.random.normal(k_m, (block_ch,), dtype=jnp.float32)
    running_var = jnp.abs(1.0 + 0.1 * jax.random.normal(
        k_v, (block_ch,), dtype=jnp.float32))

    out = conv1_1_block(x, weight, gamma, beta, running_mean, running_var)
    jax.block_until_ready(out)
    ref = _reference(x, weight, gamma, beta, running_mean, running_var)
    assert out.shape == (N, block_ch, H, W)
    assert jnp.allclose(out, ref, atol=1e-5, rtol=1e-5)

    # Case 2: mid channel counts, exercises the MXU branch.
    N2, in2, out2, H2, W2 = 1, 32, 64, 8, 8
    k_x, k_w, k_g, k_b, k_m, k_v, key = jax.random.split(key, 7)
    x2 = jax.random.normal(k_x, (N2, in2, H2, W2), dtype=jnp.float32)
    w2 = jax.random.normal(k_w, (out2, in2), dtype=jnp.float32) * 0.05
    g2 = 1.0 + 0.05 * jax.random.normal(k_g, (out2,), dtype=jnp.float32)
    b2 = 0.05 * jax.random.normal(k_b, (out2,), dtype=jnp.float32)
    m2 = 0.1 * jax.random.normal(k_m, (out2,), dtype=jnp.float32)
    v2 = jnp.abs(1.0 + 0.1 * jax.random.normal(k_v, (out2,), dtype=jnp.float32))

    o2 = conv1_1_block(x2, w2, g2, b2, m2, v2)
    jax.block_until_ready(o2)
    r2 = _reference(x2, w2, g2, b2, m2, v2)
    assert o2.shape == (N2, out2, H2, W2)
    assert jnp.allclose(o2, r2, atol=1e-4, rtol=1e-4)

    print("KERNEL_OK")
</pallas_src>

<mosaic_0001>
module attributes {stable_mosaic.version = 11 : i64} {
  func.func @_conv1x1_bn_relu6_kernel(%arg0: i32, %arg1: i32, %arg2: memref<1x4x256xf32, #tpu.memory_space<vmem>>, %arg3: memref<8x4xf32, #tpu.memory_space<vmem>>, %arg4: memref<8x1xf32, #tpu.memory_space<vmem>>, %arg5: memref<1x8x256xf32, #tpu.memory_space<vmem>>) attributes {dimension_semantics = [#tpu.dimension_semantics<parallel>, #tpu.dimension_semantics<parallel>], iteration_bounds = array<i64: 2, 1>, scalar_prefetch = 0 : i64, scratch_operands = 0 : i64, tpu.core_type = #tpu.core_type<tc>, window_params = [{transform_indices = @transform_0, window_bounds = array<i64: 1, 4, 256>}, {pipeline_mode = #tpu.pipeline_mode<synchronous>, transform_indices = @transform_1, window_bounds = array<i64: 8, 4>}, {pipeline_mode = #tpu.pipeline_mode<synchronous>, transform_indices = @transform_2, window_bounds = array<i64: 8, 1>}, {transform_indices = @transform_3, window_bounds = array<i64: 1, 8, 256>}]} {
    %c0 = arith.constant 0 : index
    %c0_0 = arith.constant 0 : index
    %0 = vector.load %arg3[%c0, %c0_0] : memref<8x4xf32, #tpu.memory_space<vmem>>, vector<8x4xf32>
    %c0_1 = arith.constant 0 : index
    %c0_2 = arith.constant 0 : index
    %1 = vector.load %arg4[%c0_1, %c0_2] : memref<8x1xf32, #tpu.memory_space<vmem>>, vector<8x1xf32>
    %c0_3 = arith.constant 0 : index
    %c0_4 = arith.constant 0 : index
    %c0_5 = arith.constant 0 : index
    %2 = vector.load %arg2[%c0_3, %c0_4, %c0_5] : memref<1x4x256xf32, #tpu.memory_space<vmem>>, vector<1x4x256xf32>
    %3 = vector.shape_cast %2 : vector<1x4x256xf32> to vector<4x256xf32>
    %4 = vector.extract_strided_slice %0 {offsets = [0, 0], sizes = [8, 1], strides = [1, 1]} : vector<8x4xf32> to vector<8x1xf32>
    %5 = vector.extract_strided_slice %3 {offsets = [0, 0], sizes = [1, 256], strides = [1, 1]} : vector<4x256xf32> to vector<1x256xf32>
    %6 = vector.broadcast %4 : vector<8x1xf32> to vector<8x256xf32>
    %7 = vector.broadcast %5 : vector<1x256xf32> to vector<8x256xf32>
    %8 = arith.mulf %6, %7 : vector<8x256xf32>
    %9 = vector.extract_strided_slice %0 {offsets = [0, 1], sizes = [8, 1], strides = [1, 1]} : vector<8x4xf32> to vector<8x1xf32>
    %10 = vector.extract_strided_slice %3 {offsets = [1, 0], sizes = [1, 256], strides = [1, 1]} : vector<4x256xf32> to vector<1x256xf32>
    %11 = vector.broadcast %9 : vector<8x1xf32> to vector<8x256xf32>
    %12 = vector.broadcast %10 : vector<1x256xf32> to vector<8x256xf32>
    %13 = arith.mulf %11, %12 : vector<8x256xf32>
    %14 = arith.addf %8, %13 : vector<8x256xf32>
    %15 = vector.extract_strided_slice %0 {offsets = [0, 2], sizes = [8, 1], strides = [1, 1]} : vector<8x4xf32> to vector<8x1xf32>
    %16 = vector.extract_strided_slice %3 {offsets = [2, 0], sizes = [1, 256], strides = [1, 1]} : vector<4x256xf32> to vector<1x256xf32>
    %17 = vector.broadcast %15 : vector<8x1xf32> to vector<8x256xf32>
    %18 = vector.broadcast %16 : vector<1x256xf32> to vector<8x256xf32>
    %19 = arith.mulf %17, %18 : vector<8x256xf32>
    %20 = arith.addf %14, %19 : vector<8x256xf32>
    %21 = vector.extract_strided_slice %0 {offsets = [0, 3], sizes = [8, 1], strides = [1, 1]} : vector<8x4xf32> to vector<8x1xf32>
    %22 = vector.extract_strided_slice %3 {offsets = [3, 0], sizes = [1, 256], strides = [1, 1]} : vector<4x256xf32> to vector<1x256xf32>
    %23 = vector.broadcast %21 : vector<8x1xf32> to vector<8x256xf32>
    %24 = vector.broadcast %22 : vector<1x256xf32> to vector<8x256xf32>
    %25 = arith.mulf %23, %24 : vector<8x256xf32>
    %26 = arith.addf %20, %25 : vector<8x256xf32>
    %27 = vector.broadcast %1 : vector<8x1xf32> to vector<8x256xf32>
    %28 = arith.addf %26, %27 : vector<8x256xf32>
    %cst = arith.constant 0.000000e+00 : f32
    %cst_6 = arith.constant 6.000000e+00 : f32
    %29 = vector.broadcast %cst : f32 to vector<8x256xf32>
    %30 = arith.maximumf %29, %28 : vector<8x256xf32>
    %31 = vector.broadcast %cst_6 : f32 to vector<8x256xf32>
    %32 = arith.minimumf %31, %30 : vector<8x256xf32>
    %c0_7 = arith.constant 0 : index
    %c0_8 = arith.constant 0 : index
    %c0_9 = arith.constant 0 : index
    %33 = vector.load %arg5[%c0_7, %c0_8, %c0_9] : memref<1x8x256xf32, #tpu.memory_space<vmem>>, vector<1x8x256xf32>
    %34 = vector.shape_cast %33 : vector<1x8x256xf32> to vector<8x256xf32>
    %35 = vector.shape_cast %32 : vector<8x256xf32> to vector<1x8x256xf32>
    tpu.vector_store %arg5[%c0_7, %c0_8, %c0_9], %35 {strides = array<i32>} : memref<1x8x256xf32, #tpu.memory_space<vmem>>, vector<1x8x256xf32>,
    return
  }
  func.func @transform_0(%arg0: i32, %arg1: i32) -> (i32, i32, i32) {
    %c0_i32 = arith.constant 0 : i32
    %c0_i32_0 = arith.constant 0 : i32
    return %arg0, %c0_i32, %arg1 : i32, i32, i32
  }
  func.func @transform_1(%arg0: i32, %arg1: i32) -> (i32, i32) {
    %c0_i32 = arith.constant 0 : i32
    %c0_i32_0 = arith.constant 0 : i32
    %c0_i32_1 = arith.constant 0 : i32
    return %c0_i32, %c0_i32_0 : i32, i32
  }
  func.func @transform_2(%arg0: i32, %arg1: i32) -> (i32, i32) {
    %c0_i32 = arith.constant 0 : i32
    %c0_i32_0 = arith.constant 0 : i32
    %c0_i32_1 = arith.constant 0 : i32
    return %c0_i32, %c0_i32_0 : i32, i32
  }
  func.func @transform_3(%arg0: i32, %arg1: i32) -> (i32, i32, i32) {
    %c0_i32 = arith.constant 0 : i32
    %c0_i32_0 = arith.constant 0 : i32
    return %arg0, %c0_i32, %arg1 : i32, i32, i32
  }
}

</mosaic_0001>

<llo_original>
// kernel: tpu_custom_call.1
$region0: #{tpu_custom_call.1}
  #allocation0 [shape = 'u32[]', space=smem, size = 0x4, offset = 0x4, fixed_abs, tag = 'smem constant byte address 0x4 - core index']
  #allocation1 [shape = 'u32[144,128]{1,0:T(1,128)}', space=vmem, size = 0x12000, scoped, tag = 'internal scratch']
  %s0 = inlined_call_operand.vmem [shape: f32[2,4,256], index: 0, kind: input, shape index: {}]
  %s1 = inlined_call_operand.vmem [shape: f32[8,4], index: 1, kind: input, shape index: {}]
  %s2 = inlined_call_operand.vmem [shape: f32[8,1], index: 2, kind: input, shape index: {}]
  %s3 = inlined_call_operand.hbm [shape: f32[2,8,256], index: 3, kind: output, shape index: {}]
  %s4 = sld [smem:[#allocation0]]
  $region45: #{tpu_custom_call.1} parent=0
    _
  %s6 = ssub.s32 1, %s4
  %s7 = scalar_select 0, %s6, %s4
  $region1: #{tpu_custom_call.1} parent=0
    #allocation2 [shape = 'u8[16384]{0}', space=vmem, size = 0x4000, scoped, tag = 'output window, operand 0']
    #allocation3 [shape = 's32[2]{0}', space=sflag, size = 0x8, scoped, tag = 'scoped memory for tpu_custom_call.1']
    %8 = vsyncpa [#allocation3], 0
    %s9 = scalar_lea.sflag [#allocation3], 1
    %10 = vsyncpa %s9, 0
    loop: start=0, step=1, limit=4
    $region2: #{tpu_custom_call.1} parent=1 // loop_pre_header
      _
    $region3: #{tpu_custom_call.1} parent=1 // loop_header
      %s12 = sphi 0, %s16
      %p13 = scmp.ge.s32.totalorder %s12, 4
      %s19 = sphi 0, %s31
      %s20 = sphi 0, %s27
      %s21 = sphi 0, %s19
      %s22 = sphi 0, %s20
      %s23 = sphi 0, %s21
      %s24 = sphi 0, %s22
      %s36 = sphi 0, %s38
      %s39 = sphi 0, %s36
      %s40 = sphi 0, %s39
      %s56 = sphi 0, %s40
      %s60 = sphi 0, %s60
      %s62 = sphi 0, %s60
      %s63 = sphi 0, %s62
      %s77 = sphi 0, %s63
      %s81 = sphi 0, %s81
      %s83 = sphi 0, %s81
      %s84 = sphi 0, %s83
      %s98 = sphi 0, %s84
      %s106 = sphi 0, %s108
      %s109 = sphi 0, %s106
      %s110 = sphi 0, %s109
      %s126 = sphi 0, %s110
    $region4: #{tpu_custom_call.1} parent=1 // loop_header_branch
      %15 = sbr.rel (%p13) target = $region8
    $region5: #{tpu_custom_call.1} parent=1 // loop_body
      %s17 = ssub.s32 %s12, 1
      %s18 = ssub.s32 %s12, 2
      %s25 = sadd.s32 1, %s20
      %p26 = scmp.ge.s32.totalorder %s25, 1
      %s27 = scalar_select %p26, 0, %s25
      %s28 = sadd.s32 1, %s19
      %s29 = scalar_select %p26, %s28, %s19
      %p30 = scmp.ge.s32.totalorder %s29, 2
      %s31 = scalar_select %p30, 0, %s29
      %s32 = ssub.s32 %s19, %s31
      %s33 = ssub.s32 %s20, %s27
      %s34 = sor.u32 %s32, %s33
      %p35 = scmp.eq.s32.totalorder %s34, 0
      %s37 = sadd.s32 %s36, 1
      %s38 = scalar_select %p35, %s36, %s37
      %p41 = pneg %p35
      %p42 = scmp.eq.s32.totalorder %s12, 1
      %p43 = por %p41, %p42
      %p44 = scmp.ne.s32.totalorder %s36, %s39
      %p45 = scmp.eq.s32.totalorder %s12, 0
      %p46 = por %p44, %p45
      %p47 = scmp.ne.s32.totalorder %s36, %s39
      %p48 = scmp.eq.s32.totalorder %s17, 1
      %p49 = por %p47, %p48
      %p50 = scmp.ne.s32.totalorder %s39, %s40
      %p51 = scmp.eq.s32.totalorder %s17, 0
      %p52 = por %p50, %p51
      %p53 = scmp.ne.s32.totalorder %s39, %s40
      %p54 = scmp.eq.s32.totalorder %s18, 1
      %p55 = por %p53, %p54
      %p57 = scmp.ne.s32.totalorder %s40, %s56
      %p58 = scmp.eq.s32.totalorder %s18, 0
      %p59 = por %p57, %p58
      %s61 = sadd.s32 %s60, 1
      %p64 = scmp.eq.s32.totalorder %s12, 1
      %p65 = scmp.ne.s32.totalorder %s60, %s62
      %p66 = scmp.eq.s32.totalorder %s12, 0
      %p67 = por %p65, %p66
      %p68 = scmp.ne.s32.totalorder %s60, %s62
      %p69 = scmp.eq.s32.totalorder %s17, 1
      %p70 = por %p68, %p69
      %p71 = scmp.ne.s32.totalorder %s62, %s63
      %p72 = scmp.eq.s32.totalorder %s17, 0
      %p73 = por %p71, %p72
      %p74 = scmp.ne.s32.totalorder %s62, %s63
      %p75 = scmp.eq.s32.totalorder %s18, 1
      %p76 = por %p74, %p75
      %p78 = scmp.ne.s32.totalorder %s63, %s77
      %p79 = scmp.eq.s32.totalorder %s18, 0
      %p80 = por %p78, %p79
      %s82 = sadd.s32 %s81, 1
      %p85 = scmp.eq.s32.totalorder %s12, 1
      %p86 = scmp.ne.s32.totalorder %s81, %s83
      %p87 = scmp.eq.s32.totalorder %s12, 0
      %p88 = por %p86, %p87
      %p89 = scmp.ne.s32.totalorder %s81, %s83
      %p90 = scmp.eq.s32.totalorder %s17, 1
      %p91 = por %p89, %p90
      %p92 = scmp.ne.s32.totalorder %s83, %s84
      %p93 = scmp.eq.s32.totalorder %s17, 0
      %p94 = por %p92, %p93
      %p95 = scmp.ne.s32.totalorder %s83, %s84
      %p96 = scmp.eq.s32.totalorder %s18, 1
      %p97 = por %p95, %p96
      %p99 = scmp.ne.s32.totalorder %s84, %s98
      %p100 = scmp.eq.s32.totalorder %s18, 0
      %p101 = por %p99, %p100
      %s102 = ssub.s32 %s19, %s31
      %s103 = ssub.s32 %s20, %s27
      %s104 = sor.u32 %s102, %s103
      %p105 = scmp.eq.s32.totalorder %s104, 0
      %s107 = sadd.s32 %s106, 1
      %s108 = scalar_select %p105, %s106, %s107
      %p111 = pneg %p105
      %p112 = scmp.eq.s32.totalorder %s12, 1
      %p113 = por %p111, %p112
      %p114 = scmp.ne.s32.totalorder %s106, %s109
      %p115 = scmp.eq.s32.totalorder %s12, 0
      %p116 = por %p114, %p115
      %p117 = scmp.ne.s32.totalorder %s106, %s109
      %p118 = scmp.eq.s32.totalorder %s17, 1
      %p119 = por %p117, %p118
      %p120 = scmp.ne.s32.totalorder %s109, %s110
      %p121 = scmp.eq.s32.totalorder %s17, 0
      %p122 = por %p120, %p121
      %p123 = scmp.ne.s32.totalorder %s109, %s110
      %p124 = scmp.eq.s32.totalorder %s18, 1
      %p125 = por %p123, %p124
      %p127 = scmp.ne.s32.totalorder %s110, %s126
      %p128 = scmp.eq.s32.totalorder %s18, 0
      %p129 = por %p127, %p128
      %p130 = scmp.le.s32.totalorder 1, %s12
      %p131 = scmp.lt.s32.totalorder %s12, 3
      %p132 = pnand %p130, %p131
      %p133 = pneg %p132
      // Predicated region
      $region9: #{tpu_custom_call.1} parent=5 // pred_check
        _
      $region10: #{tpu_custom_call.1} parent=5 // pred_check_branch
        %135 = sbr.rel (%p132) target = $region12
      $region11: #{tpu_custom_call.1} parent=5 // pred_region
        %s136 = ssub.s32 %s12, 1
        // Predicated region
        $region13: #{tpu_custom_call.1} parent=11 // pred_check
          %p137 = pneg %p73
        $region14: #{tpu_custom_call.1} parent=11 // pred_check_branch
          %139 = sbr.rel (%p137) target = $region16
        $region15: #{tpu_custom_call.1} parent=11 // pred_region
          _
        $region16: #{tpu_custom_call.1} parent=11 // pred_fallthru
          _
        // Predicated region
        $region17: #{tpu_custom_call.1} parent=11 // pred_check
          %p140 = pneg %p94
        $region18: #{tpu_custom_call.1} parent=11 // pred_check_branch
          %142 = sbr.rel (%p140) target = $region20
        $region19: #{tpu_custom_call.1} parent=11 // pred_region
          _
        $region20: #{tpu_custom_call.1} parent=11 // pred_fallthru
          _
      $region12: #{tpu_custom_call.1} parent=5 // pred_fallthru
        _
      %p143 = scmp.lt.s32.totalorder %s12, 2
      // Predicated region
      $region21: #{tpu_custom_call.1} parent=5 // pred_check
        %p144 = pneg %p143
      $region22: #{tpu_custom_call.1} parent=5 // pred_check_branch
        %146 = sbr.rel (%p144) target = $region24
      $region23: #{tpu_custom_call.1} parent=5 // pred_region
        // Predicated region
        $region25: #{tpu_custom_call.1} parent=23 // pred_check
          %p147 = pneg %p46
        $region26: #{tpu_custom_call.1} parent=23 // pred_check_branch
          %149 = sbr.rel (%p147) target = $region28
        $region27: #{tpu_custom_call.1} parent=23 // pred_region
          %s150 = smul.u32 2, %s20
          %p151 = scmp.lt.s32.totalorder %s19, 1
          %s152 = scalar_select %p151, %s19, 1
          %p153 = scmp.lt.s32.totalorder %s150, 1
          %s154 = scalar_select %p153, %s150, 1
          %s155 = smul.addr %s152, 2
          %s156 = sadd.s32 %s154, %s155
          %s157 = smul.addr %s156, 4
          %s158 = scalar_lea.vmem %s0, %s157
          %s159 = smul.u32 2, %s20
        $region28: #{tpu_custom_call.1} parent=23 // pred_fallthru
          _
      $region24: #{tpu_custom_call.1} parent=5 // pred_fallthru
        _
      %p160 = scmp.le.s32.totalorder 1, %s12
      %p161 = scmp.lt.s32.totalorder %s12, 3
      %p162 = pnand %p160, %p161
      %p163 = pneg %p162
      // Predicated region
      $region29: #{tpu_custom_call.1} parent=5 // pred_check
        _
      $region30: #{tpu_custom_call.1} parent=5 // pred_check_branch
        %165 = sbr.rel (%p162) target = $region32
      $region31: #{tpu_custom_call.1} parent=5 // pred_region
        %s166 = ssub.s32 %s12, 1
        %s167 = smul.u32 2, %s22
        %p168 = scmp.lt.s32.totalorder %s21, 1
        %s169 = scalar_select %p168, %s21, 1
        %p170 = scmp.lt.s32.totalorder %s167, 1
        %s171 = scalar_select %p170, %s167, 1
        %s172 = smul.addr %s169, 2
        %s173 = sadd.s32 %s171, %s172
        %s174 = smul.addr %s173, 4
        %s175 = scalar_lea.vmem %s0, %s174
        %p176 = pneg %p52
        %p177 = pneg %p49
        %p178 = pneg %p73
        %p179 = pneg %p70
        %p180 = pneg %p94
        %p181 = pneg %p91
        %p182 = pneg %p122
        %p183 = pneg %p119
        %s184 = sand.u32 %s109, 1
        %s185 = scalar_lea.sflag [#allocation3], %s184
        %s186 = sand.u32 %s109, 1
        %s187 = smul.addr %s186, 16
        %s188 = scalar_lea.vmem [#allocation2], %s187
        %s189 = smul.u32 2, %s22
        %p190 = scmp.lt.s32.totalorder %s21, 1
        %s191 = scalar_select %p190, %s21, 1
        %p192 = scmp.lt.s32.totalorder %s189, 1
        %s193 = scalar_select %p192, %s189, 1
        %s194 = smul.addr %s191, 2
        %s195 = sadd.s32 %s193, %s194
        %s196 = smul.addr %s195, 4
        %s197 = scalar_lea.vmem %s0, %s196
        %s198 = smul.u32 2, %s22
        %s199 = smul.u32 2, %s22
        %v200 = vld [vmem:[%s1] sm:$0xff]
        %v201 = vld [vmem:[%s2] sm:$0xff]
        %v202 = vld [vmem:[%s197] sm:$0xff]
        %204 = vset.pattern.permute.xlu0 0
        %205 = vperm.xlu0 %204, %v200
        %v206 = vpop.permute.xlu0 %205
        %v209 = vlaneseq
        %v210 = vshrl.u32 %v209, 7
        %v211 = vsub.s32 0, %v210
        %v212 = vrot.slane %v202, %v211
        %v213 = vlaneseq
        %v214 = vshrl.u32 %v213, 7
        %v215 = vsub.s32 4, %v214
        %v216 = vrot.slane %v202, %v215
        %v219 = vlaneseq
        %v220 = vshrl.u32 %v219, 7
        %v221 = vsub.s32 0, %v220
        %v222 = vrot.slane %v212, %v221
        %v223 = vlaneseq
        %v224 = vshrl.u32 %v223, 7
        %v225 = vsub.s32 0, %v224
        %v226 = vrot.slane %v216, %v225
        %v227 = vmul.f32 %v206, %v222
        %v228 = vmul.f32 %v206, %v226
        %229 = vset.pattern.permute.xlu0 1
        %230 = vperm.xlu0 %229, %v200
        %v231 = vpop.permute.xlu0 %230
        %v233 = vlaneseq
        %v234 = vshrl.u32 %v233, 7
        %v235 = vsub.s32 1, %v234
        %v236 = vrot.slane %v202, %v235
        %v237 = vlaneseq
        %v238 = vshrl.u32 %v237, 7
        %v239 = vsub.s32 5, %v238
        %v240 = vrot.slane %v202, %v239
        %v243 = vlaneseq
        %v244 = vshrl.u32 %v243, 7
        %v245 = vsub.s32 1, %v244
        %v246 = vrot.slane %v236, %v245
        %v247 = vlaneseq
        %v248 = vshrl.u32 %v247, 7
        %v249 = vsub.s32 1, %v248
        %v250 = vrot.slane %v240, %v249
        %v251 = vmul.f32 %v231, %v246
        %v252 = vmul.f32 %v231, %v250
        %v253 = vadd.f32 %v227, %v251
        %v254 = vadd.f32 %v228, %v252
        %255 = vset.pattern.permute.xlu0 2
        %256 = vperm.xlu0 %255, %v200
        %v257 = vpop.permute.xlu0 %256
        %v259 = vlaneseq
        %v260 = vshrl.u32 %v259, 7
        %v261 = vsub.s32 2, %v260
        %v262 = vrot.slane %v202, %v261
        %v263 = vlaneseq
        %v264 = vshrl.u32 %v263, 7
        %v265 = vsub.s32 6, %v264
        %v266 = vrot.slane %v202, %v265
        %v269 = vlaneseq
        %v270 = vshrl.u32 %v269, 7
        %v271 = vsub.s32 2, %v270
        %v272 = vrot.slane %v262, %v271
        %v273 = vlaneseq
        %v274 = vshrl.u32 %v273, 7
        %v275 = vsub.s32 2, %v274
        %v276 = vrot.slane %v266, %v275
        %v277 = vmul.f32 %v257, %v272
        %v278 = vmul.f32 %v257, %v276
        %v279 = vadd.f32 %v253, %v277
        %v280 = vadd.f32 %v254, %v278
        %281 = vset.pattern.permute.xlu0 3
        %282 = vperm.xlu0 %281, %v200
        %v283 = vpop.permute.xlu0 %282
        %v285 = vlaneseq
        %v286 = vshrl.u32 %v285, 7
        %v287 = vsub.s32 3, %v286
        %v288 = vrot.slane %v202, %v287
        %v289 = vlaneseq
        %v290 = vshrl.u32 %v289, 7
        %v291 = vsub.s32 7, %v290
        %v292 = vrot.slane %v202, %v291
        %v295 = vlaneseq
        %v296 = vshrl.u32 %v295, 7
        %v297 = vsub.s32 3, %v296
        %v298 = vrot.slane %v288, %v297
        %v299 = vlaneseq
        %v300 = vshrl.u32 %v299, 7
        %v301 = vsub.s32 3, %v300
        %v302 = vrot.slane %v292, %v301
        %v303 = vmul.f32 %v283, %v298
        %v304 = vmul.f32 %v283, %v302
        %v305 = vadd.f32 %v279, %v303
        %v306 = vadd.f32 %v280, %v304
        %308 = vset.pattern.permute.xlu0 0
        %309 = vperm.xlu0 %308, %v201
        %v310 = vpop.permute.xlu0 %309
        %v312 = vadd.f32 %v305, %v310
        %v313 = vadd.f32 %v306, %v310
        %v314 = vmax.f32 %v312, 0.0
        %v315 = vmax.f32 %v313, 0.0
        %v316 = vmin.f32 %v314, 6.0
        %v317 = vmin.f32 %v315, 6.0
        %318 = vst [vmem:[%s188] sm:$0xff] %v316
        %319 = vst [vmem:[%s188 + $0x8] sm:$0xff] %v317
        %s320 = sand.u32 %s109, 1
        %s321 = scalar_lea.sflag [#allocation3], %s320
        %s322 = sand.u32 %s109, 1
        %s323 = smul.addr %s322, 16
        %s324 = scalar_lea.vmem [#allocation2], %s323
        // Predicated region
        $region33: #{tpu_custom_call.1} parent=31 // pred_check
          %p325 = pneg %p119
        $region34: #{tpu_custom_call.1} parent=31 // pred_check_branch
          %327 = sbr.rel (%p325) target = $region36
        $region35: #{tpu_custom_call.1} parent=31 // pred_region
          %s328 = smul.u32 2, %s22
          %s330 = ssub.s32 256, 256
          %331 = vsyncadd %s321, %s330
          %s332 = smul.addr %s21, 2
          %s333 = sadd.s32 %s328, %s332
          %s334 = smul.addr %s333, 128
          %s335 = scalar_lea.hbm %s3, %s334
          %s337 = sshll.u32 %s324, 4
          %s338 = int_to_ptr.vmem [resolvable:$true] %s337
          %340 = dma.vmem_to_hbm [thread:$0]  %s338, 256, %s335, %s321
        $region36: #{tpu_custom_call.1} parent=31 // pred_fallthru
          _
      $region32: #{tpu_custom_call.1} parent=5 // pred_fallthru
        _
      %p341 = scmp.le.s32.totalorder 2, %s12
      // Predicated region
      $region37: #{tpu_custom_call.1} parent=5 // pred_check
        %p342 = pneg %p341
      $region38: #{tpu_custom_call.1} parent=5 // pred_check_branch
        %344 = sbr.rel (%p342) target = $region40
      $region39: #{tpu_custom_call.1} parent=5 // pred_region
        %s345 = ssub.s32 %s12, 2
        // Predicated region
        $region41: #{tpu_custom_call.1} parent=39 // pred_check
          %p346 = pneg %p125
        $region42: #{tpu_custom_call.1} parent=39 // pred_check_branch
          %348 = sbr.rel (%p346) target = $region44
        $region43: #{tpu_custom_call.1} parent=39 // pred_region
          %s349 = sand.u32 %s110, 1
          %s350 = scalar_lea.sflag [#allocation3], %s349
          %s351 = sand.u32 %s110, 1
          %s352 = smul.addr %s351, 16
          %s353 = scalar_lea.vmem [#allocation2], %s352
          %354 = dma.done %s350, 256
        $region44: #{tpu_custom_call.1} parent=39 // pred_fallthru
          _
      $region40: #{tpu_custom_call.1} parent=5 // pred_fallthru
        _
    $region6: #{tpu_custom_call.1} parent=1 // loop_footer
      %s16 = sadd.s32 1, %s12
    $region7: #{tpu_custom_call.1} parent=1 // loop_footer_branch
      %11 = sbr.rel target = $region3
    $region8: #{tpu_custom_call.1} parent=1 // loop_exit
      _
    %355 = vsyncpa [#allocation3], 1
    %s356 = scalar_lea.sflag [#allocation3], 1
    %357 = vsyncpa %s356, 1

</llo_original>
